<compile_context>
chip_gen: v6e
topology: v6e:2x2x1
jax: 0.10.0
libtpu: 0.0.40
codegen_flags: <defaults>
</compile_context>

<pallas_src>
import math
import functools

import jax
import jax.numpy as jnp
from jax import lax
from jax.experimental import pallas as pl
from jax.experimental.pallas import tpu as pltpu

# Default MLU quantization scheme (mlu_qscheme in torch_mlu); defined in-script
# since the original constant is not part of the provided snippet.
MLU_QSCHEME = {
    "iteration": 1,
    "use_avg": False,
    "data_scale": 1.0,
    "firstconv": False,
    "per_channel": False,
}

_LANES = 128
_MAX_TILE_ROWS = 2048    # 2048 x 128 f32 = 1 MiB / tile (2 MiB double-buffered)


def _sublane_multiple(dtype):
    # Minimum row multiple for a clean layout: 8 for 32-bit, 16 for bf16/f16,
    # 32 for 8-bit dtypes.
    return max(8, 256 // (jnp.dtype(dtype).itemsize * 8))


@functools.lru_cache(maxsize=1)
def _tensorcore_count():
    # Only chips with 2 TensorCores per chip (v4 / v5p / v7x megacore) benefit
    # from a 2-wide "parallel" outer grid axis; on single-TC v5e/v6e it would
    # just be a serial loop with a duplicated epilogue.
    try:
        kind = jax.devices()[0].device_kind.lower()
    except Exception:
        return 1
    return 2 if any(tag in kind for tag in ("v4", "v5p", "v7")) else 1


def _minmax_kernel(x_ref, min_ref, max_ref, *, sub):
    """Streaming global min/max.

    grid = (n_outer "parallel", n_inner "arbitrary").  The (8,128) f32 output
    blocks double as accumulators: their block index only depends on the outer
    grid index, so they stay VMEM-resident across the inner axis and are written
    back to HBM once per outer index.  Per step the loaded tile is tree-reduced
    with elementwise VPU min/max (leading-dim split of the sublane axis: no XLU,
    no (8,128)-tile-boundary crossing) and folded into the accumulator.
    """
    i = pl.program_id(1)

    @pl.when(i == 0)
    def _():
        min_ref[...] = jnp.full(min_ref.shape, jnp.inf, dtype=min_ref.dtype)
        max_ref[...] = jnp.full(max_ref.shape, -jnp.inf, dtype=max_ref.dtype)

    t = x_ref[...].astype(jnp.float32).reshape(sub, 8, _LANES)
    min_ref[...] = jnp.minimum(min_ref[...], jnp.min(t, axis=0))
    max_ref[...] = jnp.maximum(max_ref[...], jnp.max(t, axis=0))


def pallas_global_minmax(x):
    """Return (min(x), max(x)) as float32 device scalars (jit-friendly)."""
    x = jnp.asarray(x)
    n = int(x.size)
    if n == 0:
        raise ValueError("pallas_global_minmax: empty input")

    if not jnp.issubdtype(x.dtype, jnp.floating):
        # Integer / bool inputs: reduce exactly in an integer dtype via XLA (a
        # wrapper cast to f32 would add a full HBM pass and lose precision for
        # |v| >= 2**24); only the final scalar is cast.
        xi = x.astype(jnp.int32) if x.dtype == jnp.bool_ else x
        return jnp.min(xi).astype(jnp.float32), jnp.max(xi).astype(jnp.float32)

    flat = x.reshape(-1)
    sm = _sublane_multiple(x.dtype)
    rows_total = n // _LANES
    tile_rows = min(_MAX_TILE_ROWS, (rows_total // sm) * sm)
    if tile_rows == 0:
        # Tiny input (< sm*128 elements): plain XLA reduce, fuses into the jit.
        return jnp.min(flat).astype(jnp.float32), jnp.max(flat).astype(jnp.float32)

    num_blocks = rows_total // tile_rows
    main_rows = num_blocks * tile_rows
    n_main = main_rows * _LANES
    # TODO(synk): for NCHW inputs whose trailing dims are not lane-aligned the
    # flatten/reshape below may still force one XLA relayout copy; a native
    # layout variant (BlockSpec over the original 4-D shape) would remove it.
    slab = flat[:n_main].reshape(main_rows, _LANES)

    n_outer = 2 if (_tensorcore_count() >= 2 and num_blocks % 2 == 0) else 1
    n_inner = num_blocks // n_outer

    kernel = functools.partial(_minmax_kernel, sub=tile_rows // 8)
    itemsize = jnp.dtype(slab.dtype).itemsize
    cost = pl.CostEstimate(
        flops=2 * n_main,
        transcendentals=0,
        bytes_accessed=n_main * itemsize + 2 * n_outer * 8 * _LANES * 4,
    )

    min_parts, max_parts = pl.pallas_call(
        kernel,
        out_shape=(
            jax.ShapeDtypeStruct((n_outer * 8, _LANES), jnp.float32),
            jax.ShapeDtypeStruct((n_outer * 8, _LANES), jnp.float32),
        ),
        grid_spec=pltpu.PrefetchScalarGridSpec(
            num_scalar_prefetch=0,
            grid=(n_outer, n_inner),
            in_specs=[pl.BlockSpec((tile_rows, _LANES),
                                   lambda o, i: (o * n_inner + i, 0))],
            out_specs=(
                pl.BlockSpec((8, _LANES), lambda o, i: (o, 0)),
                pl.BlockSpec((8, _LANES), lambda o, i: (o, 0)),
            ),
        ),
        compiler_params=pltpu.CompilerParams(
            dimension_semantics=("parallel", "arbitrary"),
        ),
        cost_estimate=cost,
    )(slab)

    mn = jnp.min(min_parts)
    mx = jnp.max(max_parts)
    if n_main < n:
        # Ragged tail (< tile_rows*128 elements): tiny fused XLA reduce instead
        # of a full-array pad + in-kernel masking.
        tail = flat[n_main:]
        mn = jnp.minimum(mn, jnp.min(tail).astype(jnp.float32))
        mx = jnp.maximum(mx, jnp.max(tail).astype(jnp.float32))
    return mn, mx


# ----- jitted per-forward device steps (one dispatch per forward) -------------

@jax.jit
def _observe_first(x, data_scale):
    mn, mx = pallas_global_minmax(x)
    return mn * data_scale, mx * data_scale


@jax.jit
def _observe_minmax(x, data_scale, prev_min, prev_max):
    mn, mx = pallas_global_minmax(x)
    return (jnp.minimum(mn * data_scale, prev_min),
            jnp.maximum(mx * data_scale, prev_max))


@jax.jit
def _observe_avg(x, data_scale, prev_min, prev_max, ncalls):
    mn, mx = pallas_global_minmax(x)
    imin = mn * data_scale
    imax = mx * data_scale
    return ((prev_min * ncalls + imin) / (ncalls + 1.0),
            (prev_max * ncalls + imax) / (ncalls + 1.0))


class MLULrnObserver:
    """JAX/Pallas re-implementation of torch_mlu MLULrnObserver.

    forward(x): updates running min_val / max_val from a global min/max of x
    (scaled by qscheme['data_scale']), gated by the iteration counter; stats
    stay on-device until calculate_qparams().
    calculate_qparams(): scale from (min_val**2, max_val**2), as in the spec.
    """

    def __init__(self, dtype="int8", qscheme=MLU_QSCHEME):
        self.dtype = dtype
        self.qscheme = dict(MLU_QSCHEME)
        self.qscheme.update(qscheme)
        self.ncalls = 0
        self.min_val = None      # device scalars once observed
        self.max_val = None
        self.scale = None

    def get_count(self):
        return self.qscheme["iteration"]

    def forward(self, *args):
        # counter('get_count') semantics: increment first, run while allowed.
        if not (self.get_count() > self.ncalls):
            print(
                "[warning] It seems that evaluation reaches maxium img_num or "
                "iteration is in network. Quantization still works."
            )
            return
        self.ncalls += 1
        ncalls = self.ncalls   # post-increment, matching the @counter decorator

        x = args[0]
        ds = float(self.qscheme["data_scale"])
        if self.min_val is None or self.max_val is None:
            self.min_val, self.max_val = _observe_first(x, ds)
        elif self.qscheme["use_avg"]:
            self.min_val, self.max_val = _observe_avg(
                x, ds, self.min_val, self.max_val, float(ncalls))
        else:
            self.min_val, self.max_val = _observe_minmax(
                x, ds, self.min_val, self.max_val)

    __call__ = forward

    def _calculate_qparams(self, min_val, max_val):
        if max_val is None or min_val is None:
            return 1.0
        if math.isnan(max_val) or math.isnan(min_val):
            return 1.0
        assert min_val <= max_val, "min {} should be less than max {}".format(
            min_val, max_val
        )
        if self.dtype == "int8":
            qmin, qmax = (-128.0, 127.0)
        elif self.dtype == "int16":
            qmin, qmax = (-32768.0, 32767.0)
        else:
            qmin, qmax = (-128.0, 127.0)
        max_val, min_val = float(max_val), float(min_val)
        scale = 1.0
        absmax = max(max_val, -min_val)
        if absmax != 0:
            scale = qmax / absmax
        return scale

    def calculate_qparams(self):
        if self.min_val is None or self.max_val is None:
            self.scale = self._calculate_qparams(None, None)
            return
        mn = float(jax.device_get(self.min_val))
        mx = float(jax.device_get(self.max_val))
        # Spec passes squared values (and asserts min <= max on them).
        self.scale = self._calculate_qparams(mn ** 2, mx ** 2)

    def extra_repr(self):
        mn = None if self.min_val is None else float(self.min_val)
        mx = None if self.max_val is None else float(self.max_val)
        return "min_val={}, max_val={}".format(mn, mx)


if __name__ == "__main__":
    key = jax.random.PRNGKey(0)
    k1, k2 = jax.random.split(key)

    # NCHW inputs.  Use uniform[-1, 2) / [-0.5, 1.5) so that |min| < |max|:
    # the original module's calculate_qparams asserts min_val**2 <= max_val**2,
    # which symmetric (e.g. standard normal) data frequently violates.
    x1 = jax.random.uniform(k1, (2, 4, 16, 16), dtype=jnp.float32,
                            minval=-1.0, maxval=2.0)
    x2 = jax.random.uniform(k2, (2, 4, 16, 16), dtype=jnp.float32,
                            minval=-0.5, maxval=1.5)

    obs = MLULrnObserver(dtype="int8",
                         qscheme={"iteration": 4, "use_avg": False, "data_scale": 1.0})
    obs(x1)
    obs(x2)
    obs.calculate_qparams()

    got_min = float(jax.block_until_ready(obs.min_val))
    got_max = float(jax.block_until_ready(obs.max_val))
    ref_min = float(jnp.minimum(jnp.min(x1), jnp.min(x2)))
    ref_max = float(jnp.maximum(jnp.max(x1), jnp.max(x2)))
    assert abs(got_min - ref_min) < 1e-6, (got_min, ref_min)
    assert abs(got_max - ref_max) < 1e-6, (got_max, ref_max)
    assert obs.scale is not None and obs.scale > 0.0

    jitted_minmax = jax.jit(pallas_global_minmax)

    # Ragged-shape check (exercises lane-unaligned tail handled outside the kernel).
    xr = jax.random.normal(jax.random.PRNGKey(3), (3, 5, 7, 11), dtype=jnp.float32)
    rmin, rmax = jitted_minmax(xr)
    jax.block_until_ready((rmin, rmax))
    assert abs(float(rmin) - float(jnp.min(xr))) < 1e-6, (float(rmin), float(jnp.min(xr)))
    assert abs(float(rmax) - float(jnp.max(xr))) < 1e-6, (float(rmax), float(jnp.max(xr)))

    # Multi-block check (exercises the inner grid axis and, on v4/v5p/v7x, the
    # 2-wide parallel outer split).
    x3 = jax.random.normal(jax.random.PRNGKey(7), (16, 32, 32, 32), dtype=jnp.float32)
    m3, M3 = jitted_minmax(x3)
    jax.block_until_ready((m3, M3))
    assert abs(float(m3) - float(jnp.min(x3))) < 1e-6, (float(m3), float(jnp.min(x3)))
    assert abs(float(M3) - float(jnp.max(x3))) < 1e-6, (float(M3), float(jnp.max(x3)))

    # bf16 check (native-dtype streaming, 16-row sublane multiple).
    xb = jax.random.normal(jax.random.PRNGKey(9), (4, 8, 32, 32),
                           dtype=jnp.float32).astype(jnp.bfloat16)
    mb, Mb = jitted_minmax(xb)
    jax.block_until_ready((mb, Mb))
    assert abs(float(mb) - float(jnp.min(xb).astype(jnp.float32))) < 1e-6
    assert abs(float(Mb) - float(jnp.max(xb).astype(jnp.float32))) < 1e-6

    print("KERNEL_OK")
</pallas_src>

<mosaic_0001>
module attributes {stable_mosaic.version = 11 : i64} {
  func.func @_minmax_kernel(%arg0: i32, %arg1: i32, %arg2: memref<16x128xf32, #tpu.memory_space<vmem>>, %arg3: memref<8x128xf32, #tpu.memory_space<vmem>>, %arg4: memref<8x128xf32, #tpu.memory_space<vmem>>) attributes {dimension_semantics = [#tpu.dimension_semantics<parallel>, #tpu.dimension_semantics<arbitrary>], iteration_bounds = array<i64: 1, 1>, scalar_prefetch = 0 : i64, scratch_operands = 0 : i64, tpu.core_type = #tpu.core_type<tc>, window_params = [{transform_indices = @transform_0, window_bounds = array<i64: 16, 128>}, {transform_indices = @transform_1, window_bounds = array<i64: 8, 128>}, {transform_indices = @transform_2, window_bounds = array<i64: 8, 128>}]} {
    %c0_i32 = arith.constant 0 : i32
    %0 = arith.cmpi eq, %arg1, %c0_i32 : i32
    %1 = arith.extui %0 : i1 to i32
    %c0_i32_0 = arith.constant 0 : i32
    %2 = arith.cmpi ne, %1, %c0_i32_0 : i32
    scf.if %2 {
      %cst_11 = arith.constant 0x7F800000 : f32
      %13 = vector.broadcast %cst_11 : f32 to vector<8x128xf32>
      %c0_12 = arith.constant 0 : index
      %c0_13 = arith.constant 0 : index
      %14 = vector.load %arg3[%c0_12, %c0_13] : memref<8x128xf32, #tpu.memory_space<vmem>>, vector<8x128xf32>
      tpu.vector_store %arg3[%c0_12, %c0_13], %13 {strides = array<i32>} : memref<8x128xf32, #tpu.memory_space<vmem>>, vector<8x128xf32>,
      %cst_14 = arith.constant 0xFF800000 : f32
      %15 = vector.broadcast %cst_14 : f32 to vector<8x128xf32>
      %c0_15 = arith.constant 0 : index
      %c0_16 = arith.constant 0 : index
      %16 = vector.load %arg4[%c0_15, %c0_16] : memref<8x128xf32, #tpu.memory_space<vmem>>, vector<8x128xf32>
      tpu.vector_store %arg4[%c0_15, %c0_16], %15 {strides = array<i32>} : memref<8x128xf32, #tpu.memory_space<vmem>>, vector<8x128xf32>,
    } else {
    }
    %c0 = arith.constant 0 : index
    %c0_1 = arith.constant 0 : index
    %3 = vector.load %arg2[%c0, %c0_1] : memref<16x128xf32, #tpu.memory_space<vmem>>, vector<16x128xf32>
    %4 = vector.shape_cast %3 : vector<16x128xf32> to vector<2x8x128xf32>
    %c0_2 = arith.constant 0 : index
    %c0_3 = arith.constant 0 : index
    %5 = vector.load %arg3[%c0_2, %c0_3] : memref<8x128xf32, #tpu.memory_space<vmem>>, vector<8x128xf32>
    %cst = arith.constant dense<0x7F800000> : vector<8x128xf32>
    %6 = vector.multi_reduction <minimumf>, %4, %cst [0] : vector<2x8x128xf32> to vector<8x128xf32>
    %7 = arith.minimumf %5, %6 : vector<8x128xf32>
    %c0_4 = arith.constant 0 : index
    %c0_5 = arith.constant 0 : index
    %8 = vector.load %arg3[%c0_4, %c0_5] : memref<8x128xf32, #tpu.memory_space<vmem>>, vector<8x128xf32>
    tpu.vector_store %arg3[%c0_4, %c0_5], %7 {strides = array<i32>} : memref<8x128xf32, #tpu.memory_space<vmem>>, vector<8x128xf32>,
    %c0_6 = arith.constant 0 : index
    %c0_7 = arith.constant 0 : index
    %9 = vector.load %arg4[%c0_6, %c0_7] : memref<8x128xf32, #tpu.memory_space<vmem>>, vector<8x128xf32>
    %cst_8 = arith.constant dense<0xFF800000> : vector<8x128xf32>
    %10 = vector.multi_reduction <maximumf>, %4, %cst_8 [0] : vector<2x8x128xf32> to vector<8x128xf32>
    %11 = arith.maximumf %9, %10 : vector<8x128xf32>
    %c0_9 = arith.constant 0 : index
    %c0_10 = arith.constant 0 : index
    %12 = vector.load %arg4[%c0_9, %c0_10] : memref<8x128xf32, #tpu.memory_space<vmem>>, vector<8x128xf32>
    tpu.vector_store %arg4[%c0_9, %c0_10], %11 {strides = array<i32>} : memref<8x128xf32, #tpu.memory_space<vmem>>, vector<8x128xf32>,
    return
  }
  func.func @transform_0(%arg0: i32, %arg1: i32) -> (i32, i32) {
    %c1_i32 = arith.constant 1 : i32
    %0 = arith.muli %arg0, %c1_i32 : i32
    %1 = arith.addi %0, %arg1 : i32
    %c0_i32 = arith.constant 0 : i32
    %c0_i32_0 = arith.constant 0 : i32
    return %1, %c0_i32 : i32, i32
  }
  func.func @transform_1(%arg0: i32, %arg1: i32) -> (i32, i32) {
    %c0_i32 = arith.constant 0 : i32
    %c0_i32_0 = arith.constant 0 : i32
    return %arg0, %c0_i32 : i32, i32
  }
  func.func @transform_2(%arg0: i32, %arg1: i32) -> (i32, i32) {
    %c0_i32 = arith.constant 0 : i32
    %c0_i32_0 = arith.constant 0 : i32
    return %arg0, %c0_i32 : i32, i32
  }
}

</mosaic_0001>

<llo_original>
// kernel: _observe_first.1
$region0: #{_observe_first.1}
  #allocation0 [shape = 'u32[]', space=smem, size = 0x4, offset = 0x4, fixed_abs, tag = 'smem constant byte address 0x4 - core index']
  #allocation1 [shape = 'u32[144,128]{1,0:T(1,128)}', space=vmem, size = 0x12000, scoped, tag = 'internal scratch']
  %s0 = inlined_call_operand.vmem [shape: f32[16,128], index: 0, kind: input, shape index: {}]
  %s1 = inlined_call_operand.vmem [shape: f32[8,128], index: 1, kind: output, shape index: {0}]
  %s2 = inlined_call_operand.vmem [shape: f32[8,128], index: 2, kind: output, shape index: {1}]
  %3 = xla_tuple %s1, %s2
  %s4 = sld [smem:[#allocation0]]
  $region26: #{_observe_first.1} parent=0
    _
  %s6 = ssub.s32 1, %s4
  %s7 = scalar_select 0, %s6, %s4
  // Predicated region
  $region2: #{_observe_first.1} parent=0 // pred_check
    _
  $region3: #{_observe_first.1} parent=0 // pred_check_branch
    %9 = sbr.rel (0) target = $region5
  $region4: #{_observe_first.1} parent=0 // pred_region
    %s10 = sadd.s32 0, 0
    %s11 = smul.u32 2, %s10
    %p12 = scmp.lt.s32.totalorder %s11, 1
    %s13 = scalar_select %p12, %s11, 1
    %s14 = smul.addr %s13, 8
    %s15 = scalar_lea.vmem %s0, %s14
    %s16 = sadd.s32 0, 0
    %s17 = smul.u32 2, %s16
  $region5: #{_observe_first.1} parent=0 // pred_fallthru
    _
  %s18 = sadd.s32 0, 0
  %s19 = smul.u32 2, %s18
  %p20 = scmp.lt.s32.totalorder %s19, 1
  %s21 = scalar_select %p20, %s19, 1
  %s22 = smul.addr %s21, 8
  %s23 = scalar_lea.vmem %s0, %s22
  %s24 = sadd.s32 0, 0
  %s25 = smul.u32 2, %s24
  %p26 = scmp.lt.s32.totalorder %s25, 1
  %s27 = scalar_select %p26, %s25, 1
  %s28 = smul.addr %s27, 8
  %s29 = scalar_lea.vmem %s0, %s28
  %s30 = sadd.s32 0, 0
  %s31 = smul.u32 2, %s30
  %p32 = scmp.eq.s32.totalorder 0, 0
  // Predicated region
  $region6: #{_observe_first.1} parent=0 // pred_check
    %p33 = pneg %p32
  $region7: #{_observe_first.1} parent=0 // pred_check_branch
    %35 = sbr.rel (%p33) target = $region9
  $region8: #{_observe_first.1} parent=0 // pred_region
    %36 = vst [vmem:[%s1] sm:$0xff] inf
    %37 = vst [vmem:[%s2] sm:$0xff] -inf
  $region9: #{_observe_first.1} parent=0 // pred_fallthru
    _
  %v38 = vld [vmem:[%s29] sm:$0xff]
  %v39 = vld [vmem:[%s29 + $0x8] sm:$0xff]
  %v40 = vld [vmem:[%s1] sm:$0xff]
  %v41 = vmin.f32 %v38, %v39
  %v42 = vmin.f32 %v40, %v41
  %43 = vst [vmem:[%s1] sm:$0xff] %v42
  %v44 = vld [vmem:[%s2] sm:$0xff]
  %v45 = vmax.f32 %v38, %v39
  %v46 = vmax.f32 %v44, %v45
  %47 = vst [vmem:[%s2] sm:$0xff] %v46
  // Predicated region
  $region10: #{_observe_first.1} parent=0 // pred_check
    _
  $region11: #{_observe_first.1} parent=0 // pred_check_branch
    %49 = sbr.rel (0) target = $region13
  $region12: #{_observe_first.1} parent=0 // pred_region
    _
  $region13: #{_observe_first.1} parent=0 // pred_fallthru
    _
  // Predicated region
  $region14: #{_observe_first.1} parent=0 // pred_check
    _
  $region15: #{_observe_first.1} parent=0 // pred_check_branch
    %51 = sbr.rel (0) target = $region17
  $region16: #{_observe_first.1} parent=0 // pred_region
    _
  $region17: #{_observe_first.1} parent=0 // pred_fallthru
    _
  // Predicated region
  $region18: #{_observe_first.1} parent=0 // pred_check
    _
  $region19: #{_observe_first.1} parent=0 // pred_check_branch
    %53 = sbr.rel (0) target = $region21
  $region20: #{_observe_first.1} parent=0 // pred_region
    _
  $region21: #{_observe_first.1} parent=0 // pred_fallthru
    _
  // Predicated region
  $region22: #{_observe_first.1} parent=0 // pred_check
    _
  $region23: #{_observe_first.1} parent=0 // pred_check_branch
    %55 = sbr.rel (0) target = $region25
  $region24: #{_observe_first.1} parent=0 // pred_region
    _
  $region25: #{_observe_first.1} parent=0 // pred_fallthru
    _

</llo_original>
